<compile_context>
chip_gen: v5e
topology: v5e:2x2
jax: 0.10.0
libtpu: 0.0.40
codegen_flags: <defaults>
</compile_context>

<pallas_src>
import functools

import jax
import jax.numpy as jnp
from jax import lax
from jax.experimental import pallas as pl
from jax.experimental.pallas import tpu as pltpu


def _roll(a, shift, axis):
    """pltpu.roll that folds the shift and skips statically-trivial rotations."""
    size = a.shape[axis]
    shift = shift % size
    if shift == 0:
        return a
    return pltpu.roll(a, shift=shift, axis=axis)


def _hog_kernel(x_ref, out_ref, *, H, W, r):
    """Fused reflect-pad + separable 3x3 Sobel + gradient magnitude.

    Block layout is (nb, Hs, Wp) with Hs = H // r and Wp = r * W: lane c of
    super-row s holds image pixel (i, j) = (s*r + c // W, c % W).
    """
    Hs = H // r
    Wp = r * W
    x = x_ref[...]                                         # (nb, Hs, Wp)

    # Per-image masks, shape (1, Hs, Wp); jnp.where broadcasts them over nb.
    srow = lax.broadcasted_iota(jnp.int32, (1, Hs, Wp), 1)
    lane = lax.broadcasted_iota(jnp.int32, (1, Hs, Wp), 2)
    if r > 1:
        jcol = lane % W                      # column j within the image
        q_first = lane < W                   # image row s*r + 0   (first in super-row)
        q_last = lane >= (r - 1) * W         # image row s*r + r-1 (last in super-row)
        top = (srow == 0) & q_first          # i == 0
        bottom = (srow == Hs - 1) & q_last   # i == H - 1
    else:
        jcol = lane
        top = srow == 0
        bottom = srow == Hs - 1
    left_edge = jcol == 0
    right_edge = jcol == W - 1
    col_border = left_edge | right_edge
    row_border = top | bottom

    x2 = x + x

    # ---- column neighbours (reflect at j == 0 / j == W-1) ------------------
    x_l = _roll(x, 1, 2)                     # x[i, j-1] (wraps across segments)
    x_r = _roll(x, -1, 2)                    # x[i, j+1]
    x_left = jnp.where(left_edge, x_r, x_l)      # reflect: x[i,-1] = x[i, 1]
    x_right = jnp.where(right_edge, x_l, x_r)    # reflect: x[i, W] = x[i, W-2]
    h = x_left + x2 + x_right                # horizontal [1,2,1] blur

    # ---- row neighbours (cross super-rows with one sublane roll) -----------
    def row_neighbours(a, a_prev_srow, a_next_srow):
        if r > 1:
            up = _roll(jnp.where(q_last, a_prev_srow, a), W, 2)     # a[i-1, j]
            dn = _roll(jnp.where(q_first, a_next_srow, a), -W, 2)   # a[i+1, j]
        else:
            up, dn = a_prev_srow, a_next_srow
        return up, dn

    x_u, x_d = row_neighbours(x, _roll(x, 1, 1), _roll(x, -1, 1))
    x_up = jnp.where(top, x_d, x_u)          # reflect: x[-1, j] = x[1, j]
    x_down = jnp.where(bottom, x_u, x_d)     # reflect: x[H, j] = x[H-2, j]
    v = x_up + x2 + x_down                   # vertical [1,2,1] blur

    # gx[i,j] = v[i, j-1] - v[i, j+1]  (exactly 0 at j in {0, W-1} by reflect)
    gx = jnp.where(col_border, 0.0, _roll(v, 1, 2) - _roll(v, -1, 2))
    # gy[i,j] = h[i-1, j] - h[i+1, j]  (exactly 0 at i in {0, H-1} by reflect)
    h_u, h_d = row_neighbours(h, _roll(h, 1, 1), _roll(h, -1, 1))
    gy = jnp.where(row_border, 0.0, h_u - h_d)

    # torch.stack([gx, gy], -1).norm(-1) == sqrt(gx^2 + gy^2)
    out_ref[...] = jnp.sqrt(gx * gx + gy * gy)


def _padded_image_elems(H, W, r):
    """VMEM footprint (in elements) of one image packed with factor r."""
    Hs, Wp = H // r, r * W
    return (-(-Hs // 8) * 8) * (-(-Wp // 128) * 128)


def _pick_row_pack(H, W):
    """Rows packed along the lane axis.  (N,H,W)->(N,H//r,r*W) is a free
    contiguous reshape; r > 1 restores lane density when W << 128."""
    def density(r):
        return (H * W) / _padded_image_elems(H, W, r)

    divisors = [r for r in range(1, H + 1) if H % r == 0]
    best = max(divisors,
               key=lambda r: (round(density(r), 6), (r * W) % 128 == 0, -r))
    # Packing costs a few extra rolls/selects; only use it when it buys a
    # clearly better vreg utilisation.
    if best != 1 and density(best) < 1.5 * density(1):
        best = 1
    return best


def _vmem_limit_bytes():
    """Generation-aware scoped-VMEM limit (3/4 of per-core VMEM:
    ~48 MiB on v7x, ~96 MiB on v5e/v6e)."""
    try:
        cap = pltpu.get_tpu_info().vmem_capacity_bytes
    except Exception:                       # conservative fallback (v7x size)
        cap = 64 * 1024 * 1024
    return (3 * cap) // 4


def _pick_block_batch(N, img_bytes, vmem_limit):
    """Images per grid step: big enough to amortise the ~0.35us step overhead,
    small enough that double-buffered in/out blocks plus the kernel's live
    block-sized temporaries (~12x block) stay inside the VMEM budget, and at
    least 2 grid steps when N >= 2 so both v7x TensorCores get work."""
    target = min(8 * 1024 * 1024, vmem_limit // 12)
    nb = max(1, min(N, target // max(1, img_bytes)))
    if N >= 2:
        nb = min(nb, (N + 1) // 2)
    return nb


@jax.jit
def hog_layer_c(x):
    """JAX/Pallas equivalent of HOGLayerC.forward.

    x: (N, 1, H, W) float32  ->  (N, 1, H, W) float32
    (nbins / pool / gaussian_window buffers are unused by the PyTorch forward.)
    """
    N, C, H, W = x.shape
    assert C == 1, "HOGLayerC Sobel weights are (1,1,3,3); input must be single-channel"
    assert H >= 2 and W >= 2, "reflect padding requires H >= 2 and W >= 2"

    r = _pick_row_pack(H, W)
    Hs, Wp = H // r, r * W
    xp = x.reshape(N, Hs, Wp)               # free: contiguous row-major reshape

    itemsize = jnp.dtype(x.dtype).itemsize
    img_bytes = _padded_image_elems(H, W, r) * itemsize
    vmem_limit = _vmem_limit_bytes()
    nb = _pick_block_batch(N, img_bytes, vmem_limit)

    out = pl.pallas_call(
        functools.partial(_hog_kernel, H=H, W=W, r=r),
        out_shape=jax.ShapeDtypeStruct((N, Hs, Wp), x.dtype),
        grid=(pl.cdiv(N, nb),),             # ragged last block ok: images independent
        in_specs=[pl.BlockSpec((nb, Hs, Wp), lambda n: (n, 0, 0))],
        out_specs=pl.BlockSpec((nb, Hs, Wp), lambda n: (n, 0, 0)),
        compiler_params=pltpu.CompilerParams(
            dimension_semantics=("parallel",),
            vmem_limit_bytes=vmem_limit,
        ),
        cost_estimate=pl.CostEstimate(
            flops=25 * N * H * W,
            transcendentals=N * H * W,
            bytes_accessed=2 * N * H * W * itemsize,
        ),
    )(xp)

    return out.reshape(N, 1, H, W)


def _reference(x):
    """Pure-JAX reference (explicit reflect pad + 3x3 stencil)."""
    N, C, H, W = x.shape
    xr = x[:, 0]
    p = jnp.pad(xr, ((0, 0), (1, 1), (1, 1)), mode="reflect")
    a00 = p[:, 0:H, 0:W];     a01 = p[:, 0:H, 1:W + 1];     a02 = p[:, 0:H, 2:W + 2]
    a10 = p[:, 1:H + 1, 0:W];                               a12 = p[:, 1:H + 1, 2:W + 2]
    a20 = p[:, 2:H + 2, 0:W]; a21 = p[:, 2:H + 2, 1:W + 1]; a22 = p[:, 2:H + 2, 2:W + 2]
    gx = a00 - a02 + 2.0 * a10 - 2.0 * a12 + a20 - a22
    gy = a00 + 2.0 * a01 + a02 - a20 - 2.0 * a21 - a22
    return jnp.sqrt(gx * gx + gy * gy)[:, None]


if __name__ == "__main__":
    key = jax.random.PRNGKey(0)
    k1, k2, k3 = jax.random.split(key, 3)

    # Shapes implied by the module: (N, 1, H, W) -- the (1,1,3,3) Sobel weights
    # with groups=1 require a single input channel.
    tests = [
        jax.random.normal(k1, (2, 1, 16, 16), dtype=jnp.float32),   # lane-packed path (r=8)
        jax.random.normal(k2, (3, 1, 20, 24), dtype=jnp.float32),   # packed (r=4) + ragged grid
        jax.random.normal(k3, (2, 1, 8, 128), dtype=jnp.float32),   # unpacked path (r=1)
    ]
    for xt in tests:
        y = jax.block_until_ready(hog_layer_c(xt))
        y_ref = _reference(xt)
        assert y.shape == xt.shape
        assert jnp.allclose(y, y_ref, atol=1e-4, rtol=1e-5), (
            "mismatch for shape %s, max err %s"
            % (xt.shape, jnp.max(jnp.abs(y - y_ref))))

    print("KERNEL_OK")
</pallas_src>

<mosaic_0001>
module attributes {stable_mosaic.version = 11 : i64} {
  func.func @_hog_kernel(%arg0: i32, %arg1: memref<1x2x128xf32, #tpu.memory_space<vmem>>, %arg2: memref<1x2x128xf32, #tpu.memory_space<vmem>>) attributes {dimension_semantics = [#tpu.dimension_semantics<parallel>], iteration_bounds = array<i64: 2>, scalar_prefetch = 0 : i64, scratch_operands = 0 : i64, tpu.core_type = #tpu.core_type<tc>, window_params = [{transform_indices = @transform_0, window_bounds = array<i64: 1, 2, 128>}, {transform_indices = @transform_1, window_bounds = array<i64: 1, 2, 128>}]} {
    %c0 = arith.constant 0 : index
    %c0_0 = arith.constant 0 : index
    %c0_1 = arith.constant 0 : index
    %0 = vector.load %arg1[%c0, %c0_0, %c0_1] : memref<1x2x128xf32, #tpu.memory_space<vmem>>, vector<1x2x128xf32>
    %1 = tpu.iota {dimensions = array<i32: 1>} : vector<1x2x128xi32>
    %2 = tpu.iota {dimensions = array<i32: 2>} : vector<1x2x128xi32>
    %c16_i32 = arith.constant 16 : i32
    %c0_i32 = arith.constant 0 : i32
    %3 = arith.cmpi eq, %c16_i32, %c0_i32 : i32
    %c1_i32 = arith.constant 1 : i32
    %4 = arith.select %3, %c1_i32, %c16_i32 : i32
    %5 = vector.broadcast %4 : i32 to vector<1x2x128xi32>
    %6 = arith.remsi %2, %5 : vector<1x2x128xi32>
    %c0_i32_2 = arith.constant 0 : i32
    %7 = vector.broadcast %c0_i32_2 : i32 to vector<1x2x128xi32>
    %8 = arith.cmpi ne, %6, %7 : vector<1x2x128xi32>
    %c0_i32_3 = arith.constant 0 : i32
    %9 = vector.broadcast %c0_i32_3 : i32 to vector<1x2x128xi32>
    %10 = arith.cmpi slt, %6, %9 : vector<1x2x128xi32>
    %c0_i32_4 = arith.constant 0 : i32
    %11 = arith.cmpi slt, %4, %c0_i32_4 : i32
    %12 = vector.broadcast %11 : i1 to vector<1x2x128xi1>
    %13 = vector.broadcast %12 : vector<1x2x128xi1> to vector<1x2x128xi1>
    %14 = arith.xori %10, %13 : vector<1x2x128xi1>
    %15 = arith.andi %14, %8 : vector<1x2x128xi1>
    %16 = vector.broadcast %4 : i32 to vector<1x2x128xi32>
    %17 = arith.addi %6, %16 : vector<1x2x128xi32>
    %18 = arith.select %15, %17, %6 : vector<1x2x128xi1>, vector<1x2x128xi32>
    %c16_i32_5 = arith.constant 16 : i32
    %19 = vector.broadcast %c16_i32_5 : i32 to vector<1x2x128xi32>
    %20 = arith.cmpi slt, %2, %19 : vector<1x2x128xi32>
    %c112_i32 = arith.constant 112 : i32
    %21 = vector.broadcast %c112_i32 : i32 to vector<1x2x128xi32>
    %22 = arith.cmpi sge, %2, %21 : vector<1x2x128xi32>
    %c0_i32_6 = arith.constant 0 : i32
    %23 = vector.broadcast %c0_i32_6 : i32 to vector<1x2x128xi32>
    %24 = arith.cmpi eq, %1, %23 : vector<1x2x128xi32>
    %25 = arith.andi %24, %20 : vector<1x2x128xi1>
    %c1_i32_7 = arith.constant 1 : i32
    %26 = vector.broadcast %c1_i32_7 : i32 to vector<1x2x128xi32>
    %27 = arith.cmpi eq, %1, %26 : vector<1x2x128xi32>
    %28 = arith.andi %27, %22 : vector<1x2x128xi1>
    %c0_i32_8 = arith.constant 0 : i32
    %29 = vector.broadcast %c0_i32_8 : i32 to vector<1x2x128xi32>
    %30 = arith.cmpi eq, %18, %29 : vector<1x2x128xi32>
    %c15_i32 = arith.constant 15 : i32
    %31 = vector.broadcast %c15_i32 : i32 to vector<1x2x128xi32>
    %32 = arith.cmpi eq, %18, %31 : vector<1x2x128xi32>
    %33 = arith.ori %30, %32 : vector<1x2x128xi1>
    %34 = arith.ori %25, %28 : vector<1x2x128xi1>
    %35 = arith.addf %0, %0 : vector<1x2x128xf32>
    %c1_i32_9 = arith.constant 1 : i32
    %36 = tpu.dynamic_rotate %0 by %c1_i32_9 dim 2 : vector<1x2x128xf32>, i32 -> vector<1x2x128xf32>
    %c127_i32 = arith.constant 127 : i32
    %37 = tpu.dynamic_rotate %0 by %c127_i32 dim 2 : vector<1x2x128xf32>, i32 -> vector<1x2x128xf32>
    %38 = arith.select %30, %37, %36 : vector<1x2x128xi1>, vector<1x2x128xf32>
    %39 = arith.select %32, %36, %37 : vector<1x2x128xi1>, vector<1x2x128xf32>
    %40 = arith.addf %38, %35 : vector<1x2x128xf32>
    %41 = arith.addf %40, %39 : vector<1x2x128xf32>
    %c1_i32_10 = arith.constant 1 : i32
    %42 = tpu.dynamic_rotate %0 by %c1_i32_10 dim 1 : vector<1x2x128xf32>, i32 -> vector<1x2x128xf32>
    %c1_i32_11 = arith.constant 1 : i32
    %43 = tpu.dynamic_rotate %0 by %c1_i32_11 dim 1 : vector<1x2x128xf32>, i32 -> vector<1x2x128xf32>
    %44 = arith.select %22, %42, %0 : vector<1x2x128xi1>, vector<1x2x128xf32>
    %c16_i32_12 = arith.constant 16 : i32
    %45 = tpu.dynamic_rotate %44 by %c16_i32_12 dim 2 : vector<1x2x128xf32>, i32 -> vector<1x2x128xf32>
    %46 = arith.select %20, %43, %0 : vector<1x2x128xi1>, vector<1x2x128xf32>
    %c112_i32_13 = arith.constant 112 : i32
    %47 = tpu.dynamic_rotate %46 by %c112_i32_13 dim 2 : vector<1x2x128xf32>, i32 -> vector<1x2x128xf32>
    %48 = arith.select %25, %47, %45 : vector<1x2x128xi1>, vector<1x2x128xf32>
    %49 = arith.select %28, %45, %47 : vector<1x2x128xi1>, vector<1x2x128xf32>
    %50 = arith.addf %48, %35 : vector<1x2x128xf32>
    %51 = arith.addf %50, %49 : vector<1x2x128xf32>
    %c1_i32_14 = arith.constant 1 : i32
    %52 = tpu.dynamic_rotate %51 by %c1_i32_14 dim 2 : vector<1x2x128xf32>, i32 -> vector<1x2x128xf32>
    %c127_i32_15 = arith.constant 127 : i32
    %53 = tpu.dynamic_rotate %51 by %c127_i32_15 dim 2 : vector<1x2x128xf32>, i32 -> vector<1x2x128xf32>
    %54 = arith.subf %52, %53 : vector<1x2x128xf32>
    %cst = arith.constant 0.000000e+00 : f32
    %55 = vector.broadcast %cst : f32 to vector<1x2x128xf32>
    %56 = arith.select %33, %55, %54 : vector<1x2x128xi1>, vector<1x2x128xf32>
    %c1_i32_16 = arith.constant 1 : i32
    %57 = tpu.dynamic_rotate %41 by %c1_i32_16 dim 1 : vector<1x2x128xf32>, i32 -> vector<1x2x128xf32>
    %c1_i32_17 = arith.constant 1 : i32
    %58 = tpu.dynamic_rotate %41 by %c1_i32_17 dim 1 : vector<1x2x128xf32>, i32 -> vector<1x2x128xf32>
    %59 = arith.select %22, %57, %41 : vector<1x2x128xi1>, vector<1x2x128xf32>
    %c16_i32_18 = arith.constant 16 : i32
    %60 = tpu.dynamic_rotate %59 by %c16_i32_18 dim 2 : vector<1x2x128xf32>, i32 -> vector<1x2x128xf32>
    %61 = arith.select %20, %58, %41 : vector<1x2x128xi1>, vector<1x2x128xf32>
    %c112_i32_19 = arith.constant 112 : i32
    %62 = tpu.dynamic_rotate %61 by %c112_i32_19 dim 2 : vector<1x2x128xf32>, i32 -> vector<1x2x128xf32>
    %63 = arith.subf %60, %62 : vector<1x2x128xf32>
    %cst_20 = arith.constant 0.000000e+00 : f32
    %64 = vector.broadcast %cst_20 : f32 to vector<1x2x128xf32>
    %65 = arith.select %34, %64, %63 : vector<1x2x128xi1>, vector<1x2x128xf32>
    %66 = arith.mulf %56, %56 : vector<1x2x128xf32>
    %67 = arith.mulf %65, %65 : vector<1x2x128xf32>
    %68 = arith.addf %66, %67 : vector<1x2x128xf32>
    %69 = math.sqrt %68 : vector<1x2x128xf32>
    %c0_21 = arith.constant 0 : index
    %c0_22 = arith.constant 0 : index
    %c0_23 = arith.constant 0 : index
    %70 = vector.load %arg2[%c0_21, %c0_22, %c0_23] : memref<1x2x128xf32, #tpu.memory_space<vmem>>, vector<1x2x128xf32>
    tpu.vector_store %arg2[%c0_21, %c0_22, %c0_23], %69 {strides = array<i32>} : memref<1x2x128xf32, #tpu.memory_space<vmem>>, vector<1x2x128xf32>,
    return
  }
  func.func @transform_0(%arg0: i32) -> (i32, i32, i32) {
    %c0_i32 = arith.constant 0 : i32
    %c0_i32_0 = arith.constant 0 : i32
    %c0_i32_1 = arith.constant 0 : i32
    return %arg0, %c0_i32, %c0_i32_0 : i32, i32, i32
  }
  func.func @transform_1(%arg0: i32) -> (i32, i32, i32) {
    %c0_i32 = arith.constant 0 : i32
    %c0_i32_0 = arith.constant 0 : i32
    %c0_i32_1 = arith.constant 0 : i32
    return %arg0, %c0_i32, %c0_i32_0 : i32, i32, i32
  }
}

</mosaic_0001>

<llo_original>
// kernel: hog_layer_c.1
$region0: #{hog_layer_c.1}
  #allocation0 [shape = 'u32[]', space=smem, size = 0x4, offset = 0x4, fixed_abs, tag = 'smem constant byte address 0x4 - core index']
  #allocation1 [shape = 'u32[72,128]{1,0:T(1,128)}', space=vmem, size = 0x9000, scoped, tag = 'internal scratch']
  %s0 = inlined_call_operand.vmem [shape: f32[2,2,128], index: 0, kind: input, shape index: {}]
  %s1 = inlined_call_operand.vmem [shape: f32[2,2,128], index: 1, kind: output, shape index: {}]
  %s2 = sld [smem:[#allocation0]]
  $region37: #{hog_layer_c.1} parent=0
    _
  %s4 = ssub.s32 1, %s2
  %s5 = scalar_select 0, %s4, %s2
  loop: start=0, step=1, limit=4
  $region2: #{hog_layer_c.1} parent=0 // loop_pre_header
    _
  $region3: #{hog_layer_c.1} parent=0 // loop_header
    %s7 = sphi 0, %s11
    %p8 = scmp.ge.s32.totalorder %s7, 4
    %s17 = sphi 0, %s19
    %s20 = sphi 0, %s17
    %s21 = sphi 0, %s20
    %s37 = sphi 0, %s21
    %s43 = sphi 0, %s45
    %s46 = sphi 0, %s43
    %s47 = sphi 0, %s46
    %s63 = sphi 0, %s47
  $region4: #{hog_layer_c.1} parent=0 // loop_header_branch
    %10 = sbr.rel (%p8) target = $region8
  $region5: #{hog_layer_c.1} parent=0 // loop_body
    %s12 = ssub.s32 %s7, 1
    %s13 = ssub.s32 %s7, 2
    %s14 = sadd.s32 %s7, 1
    %s15 = ssub.s32 %s7, %s14
    %p16 = scmp.eq.s32.totalorder %s15, 0
    %s18 = sadd.s32 %s17, 1
    %s19 = scalar_select %p16, %s17, %s18
    %p22 = pneg %p16
    %p23 = scmp.eq.s32.totalorder %s7, 1
    %p24 = por %p22, %p23
    %p25 = scmp.ne.s32.totalorder %s17, %s20
    %p26 = scmp.eq.s32.totalorder %s7, 0
    %p27 = por %p25, %p26
    %p28 = scmp.ne.s32.totalorder %s17, %s20
    %p29 = scmp.eq.s32.totalorder %s12, 1
    %p30 = por %p28, %p29
    %p31 = scmp.ne.s32.totalorder %s20, %s21
    %p32 = scmp.eq.s32.totalorder %s12, 0
    %p33 = por %p31, %p32
    %p34 = scmp.ne.s32.totalorder %s20, %s21
    %p35 = scmp.eq.s32.totalorder %s13, 1
    %p36 = por %p34, %p35
    %p38 = scmp.ne.s32.totalorder %s21, %s37
    %p39 = scmp.eq.s32.totalorder %s13, 0
    %p40 = por %p38, %p39
    %s41 = ssub.s32 %s7, %s14
    %p42 = scmp.eq.s32.totalorder %s41, 0
    %s44 = sadd.s32 %s43, 1
    %s45 = scalar_select %p42, %s43, %s44
    %p48 = pneg %p42
    %p49 = scmp.eq.s32.totalorder %s7, 1
    %p50 = por %p48, %p49
    %p51 = scmp.ne.s32.totalorder %s43, %s46
    %p52 = scmp.eq.s32.totalorder %s7, 0
    %p53 = por %p51, %p52
    %p54 = scmp.ne.s32.totalorder %s43, %s46
    %p55 = scmp.eq.s32.totalorder %s12, 1
    %p56 = por %p54, %p55
    %p57 = scmp.ne.s32.totalorder %s46, %s47
    %p58 = scmp.eq.s32.totalorder %s12, 0
    %p59 = por %p57, %p58
    %p60 = scmp.ne.s32.totalorder %s46, %s47
    %p61 = scmp.eq.s32.totalorder %s13, 1
    %p62 = por %p60, %p61
    %p64 = scmp.ne.s32.totalorder %s47, %s63
    %p65 = scmp.eq.s32.totalorder %s13, 0
    %p66 = por %p64, %p65
    %p67 = scmp.le.s32.totalorder 1, %s7
    %p68 = scmp.lt.s32.totalorder %s7, 3
    %p69 = pnand %p67, %p68
    %p70 = pneg %p69
    // Predicated region
    $region9: #{hog_layer_c.1} parent=5 // pred_check
      _
    $region10: #{hog_layer_c.1} parent=5 // pred_check_branch
      %72 = sbr.rel (%p69) target = $region12
    $region11: #{hog_layer_c.1} parent=5 // pred_region
      %s73 = ssub.s32 %s7, 1
    $region12: #{hog_layer_c.1} parent=5 // pred_fallthru
      _
    %p74 = scmp.lt.s32.totalorder %s7, 2
    // Predicated region
    $region13: #{hog_layer_c.1} parent=5 // pred_check
      %p75 = pneg %p74
    $region14: #{hog_layer_c.1} parent=5 // pred_check_branch
      %77 = sbr.rel (%p75) target = $region16
    $region15: #{hog_layer_c.1} parent=5 // pred_region
      // Predicated region
      $region17: #{hog_layer_c.1} parent=15 // pred_check
        %p78 = pneg %p27
      $region18: #{hog_layer_c.1} parent=15 // pred_check_branch
        %80 = sbr.rel (%p78) target = $region20
      $region19: #{hog_layer_c.1} parent=15 // pred_region
        %p81 = scmp.lt.s32.totalorder %s7, 1
        %s82 = scalar_select %p81, %s7, 1
        %s83 = smul.addr %s82, 2
        %s84 = scalar_lea.vmem %s0, %s83
      $region20: #{hog_layer_c.1} parent=15 // pred_fallthru
        _
    $region16: #{hog_layer_c.1} parent=5 // pred_fallthru
      _
    %p85 = scmp.le.s32.totalorder 1, %s7
    %p86 = scmp.lt.s32.totalorder %s7, 3
    %p87 = pnand %p85, %p86
    %p88 = pneg %p87
    // Predicated region
    $region21: #{hog_layer_c.1} parent=5 // pred_check
      _
    $region22: #{hog_layer_c.1} parent=5 // pred_check_branch
      %90 = sbr.rel (%p87) target = $region24
    $region23: #{hog_layer_c.1} parent=5 // pred_region
      %s91 = ssub.s32 %s7, 1
      %p92 = scmp.lt.s32.totalorder %s12, 1
      %s93 = scalar_select %p92, %s12, 1
      %s94 = smul.addr %s93, 2
      %s95 = scalar_lea.vmem %s0, %s94
      %p96 = pneg %p33
      %p97 = pneg %p30
      %p98 = pneg %p59
      %p99 = pneg %p56
      %p100 = scmp.lt.s32.totalorder %s12, 1
      %s101 = scalar_select %p100, %s12, 1
      %s102 = smul.addr %s101, 2
      %s103 = scalar_lea.vmem %s1, %s102
      %p104 = scmp.lt.s32.totalorder %s12, 1
      %s105 = scalar_select %p104, %s12, 1
      %s106 = smul.addr %s105, 2
      %s107 = scalar_lea.vmem %s0, %s106
      %p108 = scmp.lt.s32.totalorder %s12, 1
      %s109 = scalar_select %p108, %s12, 1
      %s110 = smul.addr %s109, 2
      %s111 = scalar_lea.vmem %s1, %s110
      %v112 = vld [vmem:[%s107] sm:$0x3]
      %v113 = vlaneseq
      %v114 = vshrl.u32 %v113, 7
      %v115 = vlaneseq
      %v116 = vand.u32 %v115, 127
      %vm117 = vcmp.lt.s32.totalorder %v116, 0
      %v118 = vsub.s32 0, %v116
      %v119 = vsel %vm117, %v118, %v116
      %v120 = vshrl.u32 %v119, 4
      %v121 = vand.u32 %v119, 15
      %v122 = vsub.s32 0, %v121
      %v123 = vsel %vm117, %v122, %v121
      %vm124 = vcmp.ne.s32.totalorder %v123, 0
      %vm125 = vcmp.lt.s32.totalorder %v123, 0
      %vm126 = vmand %vm125, %vm124
      %v127 = vadd.s32 %v123, 16
      %v128 = vsel %vm126, %v127, %v123
      %vm129 = vcmp.lt.s32.totalorder %v116, 16
      %vm130 = vcmp.ge.s32.totalorder %v116, 112
      %vm131 = vcmp.eq.s32.totalorder %v114, 0
      %vm132 = vmand %vm131, %vm129
      %vm133 = vcmp.eq.s32.totalorder %v114, 1
      %vm134 = vmand %vm133, %vm130
      %vm135 = vcmp.eq.s32.totalorder %v128, 0
      %vm136 = vcmp.eq.s32.totalorder %v128, 15
      %vm137 = vmor %vm135, %vm136
      %vm138 = vmor %vm132, %vm134
      %v139 = vadd.f32 %v112, %v112
      %140 = vrot.lane.b32.xlu0 %v112, 1
      %v141 = vpop.permute.xlu0 %140
      %142 = vrot.lane.b32.xlu0 %v112, 127
      %v143 = vpop.permute.xlu0 %142
      %v144 = vsel %vm135, %v143, %v141
      %v145 = vsel %vm136, %v141, %v143
      %v146 = vadd.f32 %v144, %v139
      %v147 = vadd.f32 %v146, %v145
      %vm148 = vcmask 1047554
      %v149 = vrot.slane %v112, 6
      %v150 = vsel %vm148, %v149, %v112
      %v151 = vrot.slane %v150, 6
      %v152 = vsel %vm148, %v151, %v112
      %v154 = vrot.slane %v112, 7
      %v156 = vsel %vm130, %v152, %v154
      %v158 = vrot.slane %v156, 1
      %160 = vrot.lane.b32.xlu0 %v158, 16
      %v161 = vpop.permute.xlu0 %160
      %v162 = vsel %vm129, %v152, %v154
      %v164 = vrot.slane %v162, 1
      %166 = vrot.lane.b32.xlu0 %v164, 112
      %v167 = vpop.permute.xlu0 %166
      %v168 = vsel %vm132, %v167, %v161
      %v169 = vsel %vm134, %v161, %v167
      %v170 = vadd.f32 %v168, %v139
      %v171 = vadd.f32 %v170, %v169
      %172 = vrot.lane.b32.xlu0 %v171, 1
      %v173 = vpop.permute.xlu0 %172
      %174 = vrot.lane.b32.xlu0 %v171, 127
      %v175 = vpop.permute.xlu0 %174
      %v176 = vsub.f32 %v173, %v175
      %v177 = vsel %vm137, 0.0, %v176
      %v178 = vrot.slane %v147, 6
      %v179 = vsel %vm148, %v178, %v147
      %v180 = vrot.slane %v179, 6
      %v181 = vsel %vm148, %v180, %v147
      %v183 = vrot.slane %v147, 7
      %v185 = vsel %vm130, %v181, %v183
      %v187 = vrot.slane %v185, 1
      %189 = vrot.lane.b32.xlu0 %v187, 16
      %v190 = vpop.permute.xlu0 %189
      %v191 = vsel %vm129, %v181, %v183
      %v193 = vrot.slane %v191, 1
      %195 = vrot.lane.b32.xlu0 %v193, 112
      %v196 = vpop.permute.xlu0 %195
      %v197 = vsub.f32 %v190, %v196
      %v198 = vsel %vm138, 0.0, %v197
      %v199 = vmul.f32 %v177, %v177
      %v200 = vmul.f32 %v198, %v198
      %v201 = vadd.f32 %v199, %v200
      %v202 = vrsqrt.pop %v201
      %v203 = vmul.f32 %v202, %v201
      %v204 = vmul.f32 %v203, %v202
      %v205 = vmul.f32 0.5, %v204
      %v206 = vsub.f32 1.5, %v205
      %v207 = vmul.f32 %v202, %v206
      %v208 = vmul.f32 %v201, %v207
      %vm209 = vcmp.eq.f32.partialorder %v201, inf
      %v210 = vsel %vm209, %v201, %v208
      %vm211 = vcmp.eq.f32.partialorder %v201, 0.0
      %v212 = vand.u32 %v201, 2147483648
      %v213 = vsel %vm211, %v212, %v210
      %214 = vst [vmem:[%s111] sm:$0x3] %v213
      %p215 = scmp.lt.s32.totalorder %s12, 1
      %s216 = scalar_select %p215, %s12, 1
      %s217 = smul.addr %s216, 2
      %s218 = scalar_lea.vmem %s1, %s217
      // Predicated region
      $region25: #{hog_layer_c.1} parent=23 // pred_check
        %p219 = pneg %p56
      $region26: #{hog_layer_c.1} parent=23 // pred_check_branch
        %221 = sbr.rel (%p219) target = $region28
      $region27: #{hog_layer_c.1} parent=23 // pred_region
        _
      $region28: #{hog_layer_c.1} parent=23 // pred_fallthru
        _
    $region24: #{hog_layer_c.1} parent=5 // pred_fallthru
      _
    %p222 = scmp.le.s32.totalorder 2, %s7
    // Predicated region
    $region29: #{hog_layer_c.1} parent=5 // pred_check
      %p223 = pneg %p222
    $region30: #{hog_layer_c.1} parent=5 // pred_check_branch
      %225 = sbr.rel (%p223) target = $region32
    $region31: #{hog_layer_c.1} parent=5 // pred_region
      %s226 = ssub.s32 %s7, 2
      // Predicated region
      $region33: #{hog_layer_c.1} parent=31 // pred_check
        %p227 = pneg %p62
      $region34: #{hog_layer_c.1} parent=31 // pred_check_branch
        %229 = sbr.rel (%p227) target = $region36
      $region35: #{hog_layer_c.1} parent=31 // pred_region
        %p230 = scmp.lt.s32.totalorder %s13, 1
        %s231 = scalar_select %p230, %s13, 1
        %s232 = smul.addr %s231, 2
        %s233 = scalar_lea.vmem %s1, %s232
      $region36: #{hog_layer_c.1} parent=31 // pred_fallthru
        _
    $region32: #{hog_layer_c.1} parent=5 // pred_fallthru
      _
  $region6: #{hog_layer_c.1} parent=0 // loop_footer
    %s11 = sadd.s32 1, %s7
  $region7: #{hog_layer_c.1} parent=0 // loop_footer_branch
    %6 = sbr.rel target = $region3
  $region8: #{hog_layer_c.1} parent=0 // loop_exit
    _

</llo_original>
